<compile_context>
chip_gen: v7x
topology: tpu7x:2x2x1
jax: 0.10.0
libtpu: 0.0.40
codegen_flags: <defaults>
</compile_context>

<pallas_src>
import functools

import jax
import jax.numpy as jnp
from jax.experimental import pallas as pl
from jax.experimental.pallas import tpu as pltpu


def _round_up(x, m):
    return ((x + m - 1) // m) * m


def ffn_kernel(x_ref, w1_ref, b1_ref, w2_ref, b2_ref, o_ref, acc_ref):
    # x_ref:  (tn, E)   token tile
    # w1_ref: (E,  tf)  linear1 weight block (x @ W layout)
    # b1_ref: (1,  tf)
    # w2_ref: (tf, E)   linear2 weight block
    # b2_ref: (1,  E)
    # acc_ref:(tn, E)   f32 accumulator scratch (resident across the F axis)
    f = pl.program_id(1)

    @pl.when(f == 0)
    def _():
        # Fold the second bias into the accumulator init (free: this pass already
        # writes the accumulator).
        acc_ref[...] = jnp.broadcast_to(
            b2_ref[...].astype(jnp.float32), acc_ref.shape)

    # linear1 over this F block, f32 accumulation on the MXU, then bias + ReLU.
    h = jnp.dot(x_ref[...], w1_ref[...], preferred_element_type=jnp.float32)
    h = jnp.maximum(h + b1_ref[...].astype(jnp.float32), 0.0)
    # TODO(synk): dropout is identity here (eval-mode semantics); training-mode
    # dropout would use pltpu.prng_seed + pltpu.stateful_bernoulli with 1/(1-p) scaling.

    # Second matmul: feed h at the weight storage dtype (bf16 weights -> bf16 MXU
    # rate and half the vreg/VMEM footprint); accumulation stays f32.
    acc_ref[...] += jnp.dot(h.astype(w2_ref.dtype), w2_ref[...],
                            preferred_element_type=jnp.float32)

    @pl.when(f == pl.num_programs(1) - 1)
    def _():
        o_ref[...] = acc_ref[...].astype(o_ref.dtype)


@functools.partial(jax.jit, static_argnames=("token_tile", "f_tile"))
def positionwise_ffn(x, w1, b1, w2, b2, *, token_tile=256, f_tile=512):
    """x: (B, S, E). w1: (E, F), b1: (1, F), w2: (F, E), b2: (1, E). Returns (B, S, E)."""
    B, S, E = x.shape
    F = w1.shape[1]
    N = B * S
    x2d = x.reshape(N, E)

    # Token tile: big by default (fills the MXU M-dim, amortizes per-step overhead),
    # clamped to the (8-aligned) token count for tiny inputs.
    tn = min(_round_up(token_tile, 8), _round_up(N, 8))

    # F tile: must be a lane-aligned (multiple of 128) divisor of F, otherwise fall
    # back to the full F (weights resident) — correct for small/odd F.
    if F % f_tile == 0 and f_tile % 128 == 0:
        tf = f_tile
    else:
        tf = F

    grid = (pl.cdiv(N, tn), F // tf)

    out2d = pl.pallas_call(
        ffn_kernel,
        out_shape=jax.ShapeDtypeStruct((N, E), x.dtype),
        grid_spec=pltpu.PrefetchScalarGridSpec(
            num_scalar_prefetch=0,
            grid=grid,
            in_specs=[
                pl.BlockSpec((tn, E), lambda i, f: (i, 0)),   # x tile (reused across F)
                pl.BlockSpec((E, tf), lambda i, f: (0, f)),   # w1 block
                pl.BlockSpec((1, tf), lambda i, f: (0, f)),   # b1 block
                pl.BlockSpec((tf, E), lambda i, f: (f, 0)),   # w2 block
                pl.BlockSpec((1, E), lambda i, f: (0, 0)),    # b2
            ],
            out_specs=pl.BlockSpec((tn, E), lambda i, f: (i, 0)),
            scratch_shapes=[pltpu.VMEM((tn, E), jnp.float32)],
        ),
        compiler_params=pltpu.CompilerParams(
            dimension_semantics=("parallel", "arbitrary"),
            vmem_limit_bytes=64 * 1024 * 1024,
        ),
    )(x2d, w1, b1, w2, b2)

    return out2d.reshape(B, S, E)


def init_params(key, embed_dim, ffn_dim, dtype=jnp.float32):
    """Deterministic init matching nn.Linear's U(-1/sqrt(fan_in), 1/sqrt(fan_in))."""
    k1, k2, k3, k4 = jax.random.split(key, 4)
    bound1 = 1.0 / jnp.sqrt(embed_dim)
    bound2 = 1.0 / jnp.sqrt(ffn_dim)
    # Stored already transposed for x @ W (PyTorch stores (out, in); this is (in, out)).
    w1 = jax.random.uniform(k1, (embed_dim, ffn_dim), dtype, -bound1, bound1)
    b1 = jax.random.uniform(k2, (1, ffn_dim), dtype, -bound1, bound1)
    w2 = jax.random.uniform(k3, (ffn_dim, embed_dim), dtype, -bound2, bound2)
    b2 = jax.random.uniform(k4, (1, embed_dim), dtype, -bound2, bound2)
    return w1, b1, w2, b2


def reference_ffn(x, w1, b1, w2, b2):
    h = jnp.maximum(jnp.einsum("bse,ef->bsf", x, w1) + b1[0], 0.0)
    return jnp.einsum("bsf,fe->bse", h, w2) + b2[0]


if __name__ == "__main__":
    key = jax.random.PRNGKey(0)
    kx, kp = jax.random.split(key)

    # Small test shapes (production E/F would be multiples of 128 for lane-dense stores).
    batch, seq, embed_dim, ffn_dim = 2, 8, 32, 64
    x = jax.random.normal(kx, (batch, seq, embed_dim), jnp.float32)
    w1, b1, w2, b2 = init_params(kp, embed_dim, ffn_dim)

    out = positionwise_ffn(x, w1, b1, w2, b2)
    out = jax.block_until_ready(out)

    ref = reference_ffn(x, w1, b1, w2, b2)
    assert out.shape == (batch, seq, embed_dim)
    assert jnp.allclose(out, ref, atol=1e-5, rtol=1e-5), "mismatch vs reference"

    print("KERNEL_OK")
</pallas_src>

<mosaic_0001>
module attributes {stable_mosaic.version = 11 : i64} {
  func.func @ffn_kernel(%arg0: i32, %arg1: i32, %arg2: memref<16x32xf32, #tpu.memory_space<vmem>>, %arg3: memref<32x64xf32, #tpu.memory_space<vmem>>, %arg4: memref<1x64xf32, #tpu.memory_space<vmem>>, %arg5: memref<64x32xf32, #tpu.memory_space<vmem>>, %arg6: memref<1x32xf32, #tpu.memory_space<vmem>>, %arg7: memref<16x32xf32, #tpu.memory_space<vmem>>, %arg8: memref<16x32xf32, #tpu.memory_space<vmem>>) attributes {dimension_semantics = [#tpu.dimension_semantics<parallel>, #tpu.dimension_semantics<arbitrary>], iteration_bounds = array<i64: 1, 1>, scalar_prefetch = 0 : i64, scratch_operands = 1 : i64, tpu.core_type = #tpu.core_type<tc>, window_params = [{transform_indices = @transform_0, window_bounds = array<i64: 16, 32>}, {transform_indices = @transform_1, window_bounds = array<i64: 32, 64>}, {transform_indices = @transform_2, window_bounds = array<i64: 1, 64>}, {transform_indices = @transform_3, window_bounds = array<i64: 64, 32>}, {pipeline_mode = #tpu.pipeline_mode<synchronous>, transform_indices = @transform_4, window_bounds = array<i64: 1, 32>}, {transform_indices = @transform_5, window_bounds = array<i64: 16, 32>}]} {
    %c0_i32 = arith.constant 0 : i32
    %0 = arith.cmpi eq, %arg1, %c0_i32 : i32
    %1 = arith.extui %0 : i1 to i32
    %c0_i32_0 = arith.constant 0 : i32
    %2 = arith.cmpi ne, %1, %c0_i32_0 : i32
    scf.if %2 {
      %c0_16 = arith.constant 0 : index
      %c0_17 = arith.constant 0 : index
      %19 = vector.load %arg6[%c0_16, %c0_17] : memref<1x32xf32, #tpu.memory_space<vmem>>, vector<1x32xf32>
      %20 = vector.shape_cast %19 : vector<1x32xf32> to vector<1x32xf32>
      %21 = vector.broadcast %20 : vector<1x32xf32> to vector<16x32xf32>
      %c0_18 = arith.constant 0 : index
      %c0_19 = arith.constant 0 : index
      %22 = vector.load %arg8[%c0_18, %c0_19] : memref<16x32xf32, #tpu.memory_space<vmem>>, vector<16x32xf32>
      tpu.vector_store %arg8[%c0_18, %c0_19], %21 {strides = array<i32>} : memref<16x32xf32, #tpu.memory_space<vmem>>, vector<16x32xf32>,
    } else {
    }
    %c0 = arith.constant 0 : index
    %c0_1 = arith.constant 0 : index
    %3 = vector.load %arg2[%c0, %c0_1] : memref<16x32xf32, #tpu.memory_space<vmem>>, vector<16x32xf32>
    %c0_2 = arith.constant 0 : index
    %c0_3 = arith.constant 0 : index
    %4 = vector.load %arg3[%c0_2, %c0_3] : memref<32x64xf32, #tpu.memory_space<vmem>>, vector<32x64xf32>
    %cst = arith.constant dense<0.000000e+00> : vector<16x64xf32>
    %5 = tpu.matmul %3, %4, %cst {dimension_numbers = #tpu.dot_dimension_numbers<[1], [0], [0], [1], [0, 0, 1, 1], [], []>} : vector<16x32xf32>, vector<32x64xf32>, vector<16x64xf32> -> vector<16x64xf32>
    %c0_4 = arith.constant 0 : index
    %c0_5 = arith.constant 0 : index
    %6 = vector.load %arg4[%c0_4, %c0_5] : memref<1x64xf32, #tpu.memory_space<vmem>>, vector<1x64xf32>
    %7 = vector.broadcast %6 : vector<1x64xf32> to vector<16x64xf32>
    %8 = arith.addf %5, %7 : vector<16x64xf32>
    %cst_6 = arith.constant 0.000000e+00 : f32
    %9 = vector.broadcast %cst_6 : f32 to vector<16x64xf32>
    %10 = arith.maximumf %8, %9 : vector<16x64xf32>
    %c0_7 = arith.constant 0 : index
    %c0_8 = arith.constant 0 : index
    %11 = vector.load %arg8[%c0_7, %c0_8] : memref<16x32xf32, #tpu.memory_space<vmem>>, vector<16x32xf32>
    %c0_9 = arith.constant 0 : index
    %c0_10 = arith.constant 0 : index
    %12 = vector.load %arg5[%c0_9, %c0_10] : memref<64x32xf32, #tpu.memory_space<vmem>>, vector<64x32xf32>
    %cst_11 = arith.constant dense<0.000000e+00> : vector<16x32xf32>
    %13 = tpu.matmul %10, %12, %cst_11 {dimension_numbers = #tpu.dot_dimension_numbers<[1], [0], [0], [1], [0, 0, 1, 1], [], []>} : vector<16x64xf32>, vector<64x32xf32>, vector<16x32xf32> -> vector<16x32xf32>
    %14 = arith.addf %11, %13 : vector<16x32xf32>
    %c0_12 = arith.constant 0 : index
    %c0_13 = arith.constant 0 : index
    %15 = vector.load %arg8[%c0_12, %c0_13] : memref<16x32xf32, #tpu.memory_space<vmem>>, vector<16x32xf32>
    tpu.vector_store %arg8[%c0_12, %c0_13], %14 {strides = array<i32>} : memref<16x32xf32, #tpu.memory_space<vmem>>, vector<16x32xf32>,
    %c0_i32_14 = arith.constant 0 : i32
    %16 = arith.cmpi eq, %arg1, %c0_i32_14 : i32
    %17 = arith.extui %16 : i1 to i32
    %c0_i32_15 = arith.constant 0 : i32
    %18 = arith.cmpi ne, %17, %c0_i32_15 : i32
    scf.if %18 {
      %c0_16 = arith.constant 0 : index
      %c0_17 = arith.constant 0 : index
      %19 = vector.load %arg8[%c0_16, %c0_17] : memref<16x32xf32, #tpu.memory_space<vmem>>, vector<16x32xf32>
      %c0_18 = arith.constant 0 : index
      %c0_19 = arith.constant 0 : index
      %20 = vector.load %arg7[%c0_18, %c0_19] : memref<16x32xf32, #tpu.memory_space<vmem>>, vector<16x32xf32>
      tpu.vector_store %arg7[%c0_18, %c0_19], %19 {strides = array<i32>} : memref<16x32xf32, #tpu.memory_space<vmem>>, vector<16x32xf32>,
    } else {
    }
    return
  }
  func.func @transform_0(%arg0: i32, %arg1: i32) -> (i32, i32) {
    %c0_i32 = arith.constant 0 : i32
    %c0_i32_0 = arith.constant 0 : i32
    return %arg0, %c0_i32 : i32, i32
  }
  func.func @transform_1(%arg0: i32, %arg1: i32) -> (i32, i32) {
    %c0_i32 = arith.constant 0 : i32
    %c0_i32_0 = arith.constant 0 : i32
    return %c0_i32, %arg1 : i32, i32
  }
  func.func @transform_2(%arg0: i32, %arg1: i32) -> (i32, i32) {
    %c0_i32 = arith.constant 0 : i32
    %c0_i32_0 = arith.constant 0 : i32
    return %c0_i32, %arg1 : i32, i32
  }
  func.func @transform_3(%arg0: i32, %arg1: i32) -> (i32, i32) {
    %c0_i32 = arith.constant 0 : i32
    %c0_i32_0 = arith.constant 0 : i32
    return %arg1, %c0_i32 : i32, i32
  }
  func.func @transform_4(%arg0: i32, %arg1: i32) -> (i32, i32) {
    %c0_i32 = arith.constant 0 : i32
    %c0_i32_0 = arith.constant 0 : i32
    %c0_i32_1 = arith.constant 0 : i32
    return %c0_i32, %c0_i32_0 : i32, i32
  }
  func.func @transform_5(%arg0: i32, %arg1: i32) -> (i32, i32) {
    %c0_i32 = arith.constant 0 : i32
    %c0_i32_0 = arith.constant 0 : i32
    return %arg0, %c0_i32 : i32, i32
  }
}

</mosaic_0001>

<llo_original>
// kernel: positionwise_ffn.1
$region0: #{positionwise_ffn.1}
  #allocation0 [shape = 'u32[]', space=smem, size = 0x4, offset = 0x4, fixed_abs, tag = 'smem constant byte address 0x4 - core index']
  #allocation1 [shape = 'u32[144,128]{1,0:T(1,128)}', space=vmem, size = 0x12000, scoped, tag = 'internal scratch']
  #allocation2 [shape = 'f32[16,32]{1,0:T(8,128)}', space=vmem, size = 0x2000, scoped, tag = 'scratch operand']
  %s0 = inlined_call_operand.hbm [shape: f32[16,32], index: 0, kind: input, shape index: {}]
  %s1 = inlined_call_operand.hbm [shape: f32[32,64], index: 1, kind: input, shape index: {}]
  %s2 = inlined_call_operand.hbm [shape: f32[1,64], index: 2, kind: input, shape index: {}]
  %s3 = inlined_call_operand.hbm [shape: f32[64,32], index: 3, kind: input, shape index: {}]
  %s4 = inlined_call_operand.hbm [shape: f32[1,32], index: 4, kind: input, shape index: {}]
  %s5 = inlined_call_operand.hbm [shape: f32[16,32], index: 5, kind: output, shape index: {}]
  %s6 = sld [smem:[#allocation0]]
  $region58: #{positionwise_ffn.1} parent=0
    _
  %s8 = ssub.s32 1, %s6
  %s9 = scalar_select 0, %s8, %s6
  $region1: #{positionwise_ffn.1} parent=0
    #allocation3 [shape = 'u8[8192]{0}', space=vmem, size = 0x2000, scoped, tag = 'input window, operand 0, single buffered']
    #allocation4 [shape = 's32[1]{0}', space=sflag, size = 0x4, scoped, tag = 'scoped memory for positionwise_ffn.1']
    #allocation5 [shape = 's32[1]{0}', space=sflag, size = 0x4, scoped, tag = 'scoped memory for positionwise_ffn.1']
    #allocation6 [shape = 'u8[16384]{0}', space=vmem, size = 0x4000, scoped, tag = 'input window, operand 1, single buffered']
    #allocation7 [shape = 's32[1]{0}', space=sflag, size = 0x4, scoped, tag = 'scoped memory for positionwise_ffn.1']
    #allocation8 [shape = 'u8[512]{0}', space=vmem, size = 0x400, scoped, tag = 'input window, operand 2, single buffered']
    #allocation9 [shape = 'u8[32768]{0}', space=vmem, size = 0x8000, scoped, tag = 'input window, operand 3, single buffered']
    #allocation10 [shape = 's32[1]{0}', space=sflag, size = 0x4, scoped, tag = 'scoped memory for positionwise_ffn.1']
    #allocation11 [shape = 'u8[512]{0}', space=vmem, size = 0x400, scoped, tag = 'input window, operand 4, single buffered']
    #allocation12 [shape = 'u8[8192]{0}', space=vmem, size = 0x2000, scoped, tag = 'output window, operand 0, single buffered']
    %10 = vsyncpa [#allocation4], 0
    %11 = vsyncpa [#allocation7], 0
    %12 = vsyncpa [#allocation10], 0
    %13 = vsyncpa [#allocation5], 0
    // Predicated region
    $region2: #{positionwise_ffn.1} parent=1 // pred_check
      _
    $region3: #{positionwise_ffn.1} parent=1 // pred_check_branch
      %15 = sbr.rel (0) target = $region5
    $region4: #{positionwise_ffn.1} parent=1 // pred_region
      %s17 = ssub.s32 256, 256
      %18 = vsyncadd [#allocation4], %s17
      %s19 = sshll.u32 [#allocation3], 4
      %s20 = int_to_ptr.vmem [resolvable:$true] %s19
      %25 = dma.hbm_to_vmem [thread:$0]  %s0, 256, %s20, [#allocation4], 128, 128, 8
    $region5: #{positionwise_ffn.1} parent=1 // pred_fallthru
      _
    // Predicated region
    $region6: #{positionwise_ffn.1} parent=1 // pred_check
      _
    $region7: #{positionwise_ffn.1} parent=1 // pred_check_branch
      %27 = sbr.rel (0) target = $region9
    $region8: #{positionwise_ffn.1} parent=1 // pred_region
      %s29 = ssub.s32 512, 512
      %30 = vsyncadd [#allocation7], %s29
      %s31 = sshll.u32 [#allocation6], 4
      %s32 = int_to_ptr.vmem [resolvable:$true] %s31
      %37 = dma.hbm_to_vmem [thread:$0]  %s1, 512, %s32, [#allocation7], 128, 128, 8
    $region9: #{positionwise_ffn.1} parent=1 // pred_fallthru
      _
    // Predicated region
    $region10: #{positionwise_ffn.1} parent=1 // pred_check
      _
    $region11: #{positionwise_ffn.1} parent=1 // pred_check_branch
      %39 = sbr.rel (0) target = $region13
    $region12: #{positionwise_ffn.1} parent=1 // pred_region
      %s41 = ssub.s32 16, 16
      %42 = vsyncadd [#allocation7], %s41
      %s44 = sshll.u32 [#allocation8], 4
      %s45 = int_to_ptr.vmem [resolvable:$true] %s44
      %47 = dma.hbm_to_vmem [thread:$0]  %s2, 16, %s45, [#allocation7]
    $region13: #{positionwise_ffn.1} parent=1 // pred_fallthru
      _
    // Predicated region
    $region14: #{positionwise_ffn.1} parent=1 // pred_check
      _
    $region15: #{positionwise_ffn.1} parent=1 // pred_check_branch
      %49 = sbr.rel (0) target = $region17
    $region16: #{positionwise_ffn.1} parent=1 // pred_region
      %s51 = ssub.s32 1024, 1024
      %52 = vsyncadd [#allocation10], %s51
      %s53 = sshll.u32 [#allocation9], 4
      %s54 = int_to_ptr.vmem [resolvable:$true] %s53
      %59 = dma.hbm_to_vmem [thread:$0]  %s3, 1024, %s54, [#allocation10], 128, 128, 8
    $region17: #{positionwise_ffn.1} parent=1 // pred_fallthru
      _
    // Predicated region
    $region18: #{positionwise_ffn.1} parent=1 // pred_check
      _
    $region19: #{positionwise_ffn.1} parent=1 // pred_check_branch
      %61 = sbr.rel (0) target = $region21
    $region20: #{positionwise_ffn.1} parent=1 // pred_region
      %s63 = ssub.s32 16, 16
      %64 = vsyncadd [#allocation10], %s63
      %s66 = sshll.u32 [#allocation11], 4
      %s67 = int_to_ptr.vmem [resolvable:$true] %s66
      %69 = dma.hbm_to_vmem [thread:$0]  %s4, 16, %s67, [#allocation10]
    $region21: #{positionwise_ffn.1} parent=1 // pred_fallthru
      _
    // Predicated region
    $region22: #{positionwise_ffn.1} parent=1 // pred_check
      _
    $region23: #{positionwise_ffn.1} parent=1 // pred_check_branch
      %71 = sbr.rel (0) target = $region25
    $region24: #{positionwise_ffn.1} parent=1 // pred_region
      %72 = dma.done [#allocation4], 256
    $region25: #{positionwise_ffn.1} parent=1 // pred_fallthru
      _
    // Predicated region
    $region26: #{positionwise_ffn.1} parent=1 // pred_check
      _
    $region27: #{positionwise_ffn.1} parent=1 // pred_check_branch
      %74 = sbr.rel (0) target = $region29
    $region28: #{positionwise_ffn.1} parent=1 // pred_region
      %75 = dma.done [#allocation7], 512
    $region29: #{positionwise_ffn.1} parent=1 // pred_fallthru
      _
    // Predicated region
    $region30: #{positionwise_ffn.1} parent=1 // pred_check
      _
    $region31: #{positionwise_ffn.1} parent=1 // pred_check_branch
      %77 = sbr.rel (0) target = $region33
    $region32: #{positionwise_ffn.1} parent=1 // pred_region
      %78 = dma.done [#allocation7], 16
    $region33: #{positionwise_ffn.1} parent=1 // pred_fallthru
      _
    // Predicated region
    $region34: #{positionwise_ffn.1} parent=1 // pred_check
      _
    $region35: #{positionwise_ffn.1} parent=1 // pred_check_branch
      %80 = sbr.rel (0) target = $region37
    $region36: #{positionwise_ffn.1} parent=1 // pred_region
      %81 = dma.done [#allocation10], 1024
    $region37: #{positionwise_ffn.1} parent=1 // pred_fallthru
      _
    // Predicated region
    $region38: #{positionwise_ffn.1} parent=1 // pred_check
      _
    $region39: #{positionwise_ffn.1} parent=1 // pred_check_branch
      %83 = sbr.rel (0) target = $region41
    $region40: #{positionwise_ffn.1} parent=1 // pred_region
      %84 = dma.done [#allocation10], 16
    $region41: #{positionwise_ffn.1} parent=1 // pred_fallthru
      _
    %p85 = scmp.eq.s32.totalorder 0, 0
    // Predicated region
    $region42: #{positionwise_ffn.1} parent=1 // pred_check
      %p86 = pneg %p85
    $region43: #{positionwise_ffn.1} parent=1 // pred_check_branch
      %88 = sbr.rel (%p86) target = $region45
    $region44: #{positionwise_ffn.1} parent=1 // pred_region
      %v89 = vld [vmem:[#allocation11] sm:$0x1]
      %v91 = vlaneseq
      %v92 = vshrl.u32 %v91, 7
      %v93 = vsub.s32 0, %v92
      %v94 = vrot.slane %v89, %v93
      %vm96 = vcmask 261120
      %97 = vst.msk [vmem:[#allocation2] sm:$0xff] %vm96, %v94
      %98 = vst.msk [vmem:[#allocation2 + $0x8] sm:$0xff] %vm96, %v94
    $region45: #{positionwise_ffn.1} parent=1 // pred_fallthru
      _
    %v99 = vld [vmem:[#allocation3] sm:$0xff]
    %v100 = vld [vmem:[#allocation3 + $0x8] sm:$0xff]
    %v101 = vld [vmem:[#allocation6] sm:$0xff]
    %v102 = vld [vmem:[#allocation6 + $0x8] sm:$0xff]
    %v103 = vld [vmem:[#allocation6 + $0x10] sm:$0xff]
    %v104 = vld [vmem:[#allocation6 + $0x18] sm:$0xff]
    %v105 = vld [vmem:[#allocation8] sm:$0x1]
    %v107 = vlaneseq
    %v108 = vshrl.u32 %v107, 7
    %v109 = vsub.s32 0, %v108
    %v110 = vrot.slane %v105, %v109
    %vm112 = vcmask 261120
    %v114 = vsel %vm112, %v99, 0
    %v117 = vsel %vm112, %v100, 0
    %119 = vmatprep.subr.mxu0 0.0
    %120 = vmatpush1.msra.mxu0 %v101
    %121 = vmatprep.subr.mxu0 0.0
    %122 = vmatpush1.msra.mxu0 %v102
    %123 = vmatprep.subr.mxu0 0.0
    %124 = vmatpush1.msra.mxu0 %v103
    %125 = vmatprep.subr.mxu0 0.0
    %126 = vmatpush1.msra.mxu0 %v104
    %127 = vmatprep.subr.mxu0 0.0
    %128 = vmatpush1.msra.mxu0 0.0
    %129 = vmatprep.subr.mxu0 0.0
    %130 = vmatpush1.msra.mxu0 0.0
    %131 = vmatprep.subr.mxu0 0.0
    %132 = vmatpush1.msra.mxu0 0.0
    %133 = vmatprep.subr.mxu0 0.0
    %134 = vmatpush1.msra.mxu0 0.0
    %135 = vmatprep.subr.mxu0 0.0
    %136 = vmatpush1.msra.mxu0 0.0
    %137 = vmatprep.subr.mxu0 0.0
    %138 = vmatpush1.msra.mxu0 0.0
    %139 = vmatprep.subr.mxu0 0.0
    %140 = vmatpush1.msra.mxu0 0.0
    %141 = vmatprep.subr.mxu0 0.0
    %142 = vmatpush1.msra.mxu0 0.0
    %143 = vmatprep.subr.mxu0 0.0
    %144 = vmatpush1.msra.mxu0 0.0
    %145 = vmatprep.subr.mxu0 0.0
    %146 = vmatpush1.msra.mxu0 0.0
    %147 = vmatprep.subr.mxu0 0.0
    %148 = vmatpush1.msra.mxu0 0.0
    %149 = vmatprep.subr.mxu0 0.0
    %150 = vmatpush1.msra.mxu0 0.0
    %151 = vmatprep.subr.mxu0 0.0
    %152 = vmatpush1.msra.mxu0 0.0
    %153 = vmatprep.subr.mxu0 0.0
    %154 = vmatpush1.msra.mxu0 0.0
    %155 = vmatprep.subr.mxu0 0.0
    %156 = vmatpush1.msra.mxu0 0.0
    %157 = vmatprep.subr.mxu0 0.0
    %158 = vmatpush1.msra.mxu0 0.0
    %159 = vmatprep.subr.mxu0 0.0
    %160 = vmatpush1.msra.mxu0 0.0
    %161 = vmatprep.subr.mxu0 0.0
    %162 = vmatpush1.msra.mxu0 0.0
    %163 = vmatprep.subr.mxu0 0.0
    %164 = vmatpush1.msra.mxu0 0.0
    %165 = vmatprep.subr.mxu0 0.0
    %166 = vmatpush1.msra.mxu0 0.0
    %167 = vmatprep.subr.mxu0 0.0
    %168 = vmatpush1.msra.mxu0 0.0
    %169 = vmatprep.subr.mxu0 0.0
    %170 = vmatpush1.msra.mxu0 0.0
    %171 = vmatprep.subr.mxu0 0.0
    %172 = vmatpush1.msra.mxu0 0.0
    %173 = vmatprep.subr.mxu0 0.0
    %174 = vmatpush1.msra.mxu0 0.0
    %175 = vmatprep.subr.mxu0 0.0
    %176 = vmatpush1.msra.mxu0 0.0
    %177 = vmatprep.subr.mxu0 0.0
    %178 = vmatpush1.msra.mxu0 0.0
    %179 = vmatprep.subr.mxu0 0.0
    %180 = vmatpush1.msra.mxu0 0.0
    %181 = vmatprep.subr.mxu0 0.0
    %182 = vmatpush1.msra.mxu0 0.0
    %183 = vmatprep.mubr.f32.mxu0 0.0
    %184 = vmatmul.mubr.f32.gmra.mrb[0].mxu0 %v114
    %v185 = vpop.f32.mrb[0].mxu0
    %v186 = vadd.f32 %v110, %v185
    %v187 = vpop.f32.mrb[0].mxu0
    %188 = vmatprep.mubr.f32.mxu0 0.0
    %189 = vmatmul.mubr.f32.gmra.mrb[0].mxu0 %v117
    %v190 = vpop.f32.mrb[0].mxu0
    %v191 = vadd.f32 %v110, %v190
    %v192 = vpop.f32.mrb[0].mxu0
    %193 = vdwg.mxu0
    %v194 = vmax.f32 %v186, 0.0
    %v195 = vmax.f32 %v191, 0.0
    %v196 = vld [vmem:[#allocation2] sm:$0xff]
    %v197 = vld [vmem:[#allocation2 + $0x8] sm:$0xff]
    %v198 = vld [vmem:[#allocation9] sm:$0xff]
    %v199 = vld [vmem:[#allocation9 + $0x8] sm:$0xff]
    %v200 = vld [vmem:[#allocation9 + $0x10] sm:$0xff]
    %v201 = vld [vmem:[#allocation9 + $0x18] sm:$0xff]
    %v202 = vld [vmem:[#allocation9 + $0x20] sm:$0xff]
    %v203 = vld [vmem:[#allocation9 + $0x28] sm:$0xff]
    %v204 = vld [vmem:[#allocation9 + $0x30] sm:$0xff]
    %v205 = vld [vmem:[#allocation9 + $0x38] sm:$0xff]
    %vm206 = vcmask 523264
    %v208 = vsel %vm206, %v194, 0
    %v211 = vsel %vm206, %v195, 0
    %213 = vmatprep.subr.mxu0 0.0
    %214 = vmatpush1.msra.mxu0 %v198
    %215 = vmatprep.subr.mxu0 0.0
    %216 = vmatpush1.msra.mxu0 %v199
    %217 = vmatprep.subr.mxu0 0.0
    %218 = vmatpush1.msra.mxu0 %v200
    %219 = vmatprep.subr.mxu0 0.0
    %220 = vmatpush1.msra.mxu0 %v201
    %221 = vmatprep.subr.mxu0 0.0
    %222 = vmatpush1.msra.mxu0 %v202
    %223 = vmatprep.subr.mxu0 0.0
    %224 = vmatpush1.msra.mxu0 %v203
    %225 = vmatprep.subr.mxu0 0.0
    %226 = vmatpush1.msra.mxu0 %v204
    %227 = vmatprep.subr.mxu0 0.0
    %228 = vmatpush1.msra.mxu0 %v205
    %229 = vmatprep.subr.mxu0 0.0
    %230 = vmatpush1.msra.mxu0 0.0
    %231 = vmatprep.subr.mxu0 0.0
    %232 = vmatpush1.msra.mxu0 0.0
    %233 = vmatprep.subr.mxu0 0.0
    %234 = vmatpush1.msra.mxu0 0.0
    %235 = vmatprep.subr.mxu0 0.0
    %236 = vmatpush1.msra.mxu0 0.0
    %237 = vmatprep.subr.mxu0 0.0
    %238 = vmatpush1.msra.mxu0 0.0
    %239 = vmatprep.subr.mxu0 0.0
    %240 = vmatpush1.msra.mxu0 0.0
    %241 = vmatprep.subr.mxu0 0.0
    %242 = vmatpush1.msra.mxu0 0.0
    %243 = vmatprep.subr.mxu0 0.0
    %244 = vmatpush1.msra.mxu0 0.0
    %245 = vmatprep.subr.mxu0 0.0
    %246 = vmatpush1.msra.mxu0 0.0
    %247 = vmatprep.subr.mxu0 0.0
    %248 = vmatpush1.msra.mxu0 0.0
    %249 = vmatprep.subr.mxu0 0.0
    %250 = vmatpush1.msra.mxu0 0.0
    %251 = vmatprep.subr.mxu0 0.0
    %252 = vmatpush1.msra.mxu0 0.0
    %253 = vmatprep.subr.mxu0 0.0
    %254 = vmatpush1.msra.mxu0 0.0
    %255 = vmatprep.subr.mxu0 0.0
    %256 = vmatpush1.msra.mxu0 0.0
    %257 = vmatprep.subr.mxu0 0.0
    %258 = vmatpush1.msra.mxu0 0.0
    %259 = vmatprep.subr.mxu0 0.0
    %260 = vmatpush1.msra.mxu0 0.0
    %261 = vmatprep.subr.mxu0 0.0
    %262 = vmatpush1.msra.mxu0 0.0
    %263 = vmatprep.subr.mxu0 0.0
    %264 = vmatpush1.msra.mxu0 0.0
    %265 = vmatprep.subr.mxu0 0.0
    %266 = vmatpush1.msra.mxu0 0.0
    %267 = vmatprep.subr.mxu0 0.0
    %268 = vmatpush1.msra.mxu0 0.0
    %269 = vmatprep.subr.mxu0 0.0
    %270 = vmatpush1.msra.mxu0 0.0
    %271 = vmatprep.subr.mxu0 0.0
    %272 = vmatpush1.msra.mxu0 0.0
    %273 = vmatprep.subr.mxu0 0.0
    %274 = vmatpush1.msra.mxu0 0.0
    %275 = vmatprep.subr.mxu0 0.0
    %276 = vmatpush1.msra.mxu0 0.0
    %277 = vmatprep.mubr.f32.mxu0 0.0
    %278 = vmatmul.mubr.f32.gmra.mrb[0].mxu0 %v208
    %v279 = vpop.f32.mrb[0].mxu0
    %v280 = vadd.f32 0.0, %v279
    %v281 = vpop.f32.mrb[0].mxu0
    %282 = vmatprep.mubr.f32.mxu0 0.0
    %283 = vmatmul.mubr.f32.gmra.mrb[0].mxu0 %v211
    %v284 = vpop.f32.mrb[0].mxu0
    %v285 = vadd.f32 0.0, %v284
    %v286 = vpop.f32.mrb[0].mxu0
    %287 = vdwg.mxu0
    %v288 = vadd.f32 %v196, %v280
    %v289 = vadd.f32 %v197, %v285
    %290 = vst.msk [vmem:[#allocation2] sm:$0xff] %vm112, %v288
    %291 = vst.msk [vmem:[#allocation2 + $0x8] sm:$0xff] %vm112, %v289
    // Predicated region
    $region46: #{positionwise_ffn.1} parent=1 // pred_check
      %p292 = pneg %p85
    $region47: #{positionwise_ffn.1} parent=1 // pred_check_branch
      %294 = sbr.rel (%p292) target = $region49
    $region48: #{positionwise_ffn.1} parent=1 // pred_region
      %v295 = vld [vmem:[#allocation2] sm:$0xff]
      %v296 = vld [vmem:[#allocation2 + $0x8] sm:$0xff]
      %297 = vst.msk [vmem:[#allocation12] sm:$0xff] %vm112, %v295
      %298 = vst.msk [vmem:[#allocation12 + $0x8] sm:$0xff] %vm112, %v296
    $region49: #{positionwise_ffn.1} parent=1 // pred_fallthru
      _
    // Predicated region
    $region50: #{positionwise_ffn.1} parent=1 // pred_check
      _
    $region51: #{positionwise_ffn.1} parent=1 // pred_check_branch
      %300 = sbr.rel (0) target = $region53
    $region52: #{positionwise_ffn.1} parent=1 // pred_region
      %s302 = ssub.s32 256, 256
      %303 = vsyncadd [#allocation5], %s302
      %s304 = sshll.u32 [#allocation12], 4
      %s305 = int_to_ptr.vmem [resolvable:$true] %s304
      %310 = dma.vmem_to_hbm [thread:$0]  %s305, 256, %s5, [#allocation5], 128, 128, 8
    $region53: #{positionwise_ffn.1} parent=1 // pred_fallthru
      _
    // Predicated region
    $region54: #{positionwise_ffn.1} parent=1 // pred_check
      _
    $region55: #{positionwise_ffn.1} parent=1 // pred_check_branch
      %312 = sbr.rel (0) target = $region57
    $region56: #{positionwise_ffn.1} parent=1 // pred_region
      %313 = dma.done [#allocation5], 256
    $region57: #{positionwise_ffn.1} parent=1 // pred_fallthru
      _
    %314 = vsyncpa [#allocation4], 1
    %315 = vsyncpa [#allocation7], 1
    %316 = vsyncpa [#allocation10], 1
    %317 = vsyncpa [#allocation5], 1

</llo_original>
